<compile_context>
chip_gen: v7x
topology: tpu7x:2x2x1
jax: 0.10.0
libtpu: 0.0.40
codegen_flags: <defaults>
</compile_context>

<pallas_src>
import functools

import jax
import jax.numpy as jnp
from jax.experimental import pallas as pl
from jax.experimental.pallas import tpu as pltpu


def _round_up(x, m):
    return ((x + m - 1) // m) * m


def _pick_divisor(total, candidates):
    for c in candidates:
        if total % c == 0:
            return c
    return total


def _ffn_kernel(x_ref, gamma_ref, beta_ref, w1_ref, b1_ref, w2_ref, b2_ref,
                o_ref, xn_ref, acc_ref, *, eps):
    """Grid = (row tiles, hidden chunks).  Hidden axis is a reduction.

    x_ref     : (tm, D)   input row tile
    w1_ref    : (D, th)   bf16 chunk of first weight (in, out layout)
    b1_ref    : (1, th)
    w2_ref    : (th, D)   bf16 chunk of second weight
    b2_ref    : (1, D)
    xn_ref    : (tm, D)   bf16 scratch holding LayerNorm output (reused per chunk)
    acc_ref   : (tm, D)   f32 accumulator for the second matmul
    """
    h_idx = pl.program_id(1)

    # --- Per-row-tile init: LayerNorm (f32 stats on VPU) + zero accumulator ---
    @pl.when(h_idx == 0)
    def _():
        x = x_ref[...].astype(jnp.float32)
        mu = jnp.mean(x, axis=-1, keepdims=True)
        xc = x - mu
        var = jnp.mean(xc * xc, axis=-1, keepdims=True)
        xn = xc * jax.lax.rsqrt(var + eps)
        xn = xn * gamma_ref[...].astype(jnp.float32) + beta_ref[...].astype(jnp.float32)
        xn_ref[...] = xn.astype(xn_ref.dtype)          # bf16 for the MXU
        acc_ref[...] = jnp.zeros_like(acc_ref)

    # --- Linear 1 chunk (D -> th), bf16 MXU, f32 accumulate; Swish in f32 ---
    h = jnp.dot(xn_ref[...], w1_ref[...], preferred_element_type=jnp.float32)
    h = h + b1_ref[...].astype(jnp.float32)
    h = h * jax.nn.sigmoid(h)                          # Swish / SiLU (EUP)

    # TODO(synk): dropout omitted (inference-mode identity; no RNG mask applied)

    # --- Linear 2 chunk (th -> D), accumulate in f32 ---
    acc_ref[...] += jnp.dot(h.astype(w2_ref.dtype), w2_ref[...],
                            preferred_element_type=jnp.float32)

    # --- Finalize: add output bias, cast, store ---
    @pl.when(h_idx == pl.num_programs(1) - 1)
    def _():
        y = acc_ref[...] + b2_ref[...].astype(jnp.float32)
        o_ref[...] = y.astype(o_ref.dtype)


def feed_forward_module(x, gamma, beta, w1, b1, w2, b2, *, eps=1e-5,
                        tm=256, th=None):
    """x: (batch, time, dim) -> (batch, time, dim)."""
    B, T, D = x.shape
    H = w1.shape[1]
    M = B * T
    x2 = x.reshape(M, D)

    # Weights to bf16: halves HBM->VMEM DMA / resident VMEM, feeds the bf16 MXU.
    w1b = w1.astype(jnp.bfloat16)
    w2b = w2.astype(jnp.bfloat16)

    # Row tile: big (default 256) for MXU utilization, but never bigger than
    # the (sublane-rounded) problem. Pad rows instead of asserting divisibility.
    tm_eff = min(tm, _round_up(M, 8))
    Mp = _round_up(M, tm_eff)
    if Mp != M:
        x2 = jnp.pad(x2, ((0, Mp - M), (0, 0)))

    # Hidden-dim tile: bounds resident weight VMEM (v7x 64 MiB budget) while
    # keeping lane-aligned (multiple of 128) chunks.
    if th is None:
        th = _pick_divisor(H, (2048, 1024, 512, 256, 128))
    assert H % th == 0

    grid = (Mp // tm_eff, H // th)
    kernel = functools.partial(_ffn_kernel, eps=eps)

    itemsize = jnp.dtype(x.dtype).itemsize
    cost = pl.CostEstimate(
        flops=4 * Mp * D * H,                 # two (M,D)x(D,H)-class matmuls
        transcendentals=Mp * H,               # sigmoid in Swish
        bytes_accessed=(Mp * D * itemsize * 2          # x in + out
                        + (D * H + H * D) * 2          # bf16 weights
                        + (H + 3 * D) * 4),            # biases + gamma/beta
    )

    out = pl.pallas_call(
        kernel,
        out_shape=jax.ShapeDtypeStruct((Mp, D), x.dtype),
        grid_spec=pltpu.PrefetchScalarGridSpec(
            num_scalar_prefetch=0,
            grid=grid,
            in_specs=[
                pl.BlockSpec((tm_eff, D), lambda i, h: (i, 0)),  # x row tile
                pl.BlockSpec((1, D), lambda i, h: (0, 0)),       # gamma
                pl.BlockSpec((1, D), lambda i, h: (0, 0)),       # beta
                pl.BlockSpec((D, th), lambda i, h: (0, h)),      # W1 chunk (in, out)
                pl.BlockSpec((1, th), lambda i, h: (0, h)),      # b1 chunk
                pl.BlockSpec((th, D), lambda i, h: (h, 0)),      # W2 chunk (in, out)
                pl.BlockSpec((1, D), lambda i, h: (0, 0)),       # b2
            ],
            out_specs=pl.BlockSpec((tm_eff, D), lambda i, h: (i, 0)),
            scratch_shapes=[
                pltpu.VMEM((tm_eff, D), jnp.bfloat16),   # LayerNorm output (MXU LHS)
                pltpu.VMEM((tm_eff, D), jnp.float32),    # f32 accumulator
            ],
        ),
        compiler_params=pltpu.CompilerParams(
            dimension_semantics=("parallel", "arbitrary")),
        cost_estimate=cost,
    )(x2, gamma, beta, w1b, b1, w2b, b2)

    if Mp != M:
        out = out[:M]
    return out.reshape(B, T, D)


def _reference(x, gamma, beta, w1, b1, w2, b2, eps=1e-5):
    xf = x.astype(jnp.float32)
    mu = jnp.mean(xf, axis=-1, keepdims=True)
    var = jnp.mean((xf - mu) ** 2, axis=-1, keepdims=True)
    xn = (xf - mu) * jax.lax.rsqrt(var + eps) * gamma + beta
    h = xn @ w1.astype(jnp.float32) + b1
    h = h * jax.nn.sigmoid(h)
    y = h @ w2.astype(jnp.float32) + b2
    return y.astype(x.dtype)


if __name__ == "__main__":
    # Small shapes consistent with (batch, time, dim) inputs.
    batch, time, encoder_dim, expansion = 2, 8, 32, 4
    hidden = encoder_dim * expansion

    key = jax.random.PRNGKey(0)
    kx, kw1, kb1, kw2, kb2 = jax.random.split(key, 5)

    x = jax.random.normal(kx, (batch, time, encoder_dim), dtype=jnp.float32)

    # Deterministic parameter init (PyTorch default: LayerNorm gamma=1, beta=0;
    # Linear weights ~ uniform scaled by 1/sqrt(fan_in)).
    gamma = jnp.ones((1, encoder_dim), dtype=jnp.float32)
    beta = jnp.zeros((1, encoder_dim), dtype=jnp.float32)
    w1 = jax.random.uniform(kw1, (encoder_dim, hidden), jnp.float32,
                            -1.0, 1.0) / jnp.sqrt(encoder_dim)
    b1 = jax.random.uniform(kb1, (1, hidden), jnp.float32,
                            -1.0, 1.0) / jnp.sqrt(encoder_dim)
    w2 = jax.random.uniform(kw2, (hidden, encoder_dim), jnp.float32,
                            -1.0, 1.0) / jnp.sqrt(hidden)
    b2 = jax.random.uniform(kb2, (1, encoder_dim), jnp.float32,
                            -1.0, 1.0) / jnp.sqrt(hidden)

    out = feed_forward_module(x, gamma, beta, w1, b1, w2, b2)
    out = jax.block_until_ready(out)

    ref = _reference(x, gamma, beta, w1, b1, w2, b2)
    assert out.shape == (batch, time, encoder_dim)
    # bf16 MXU operands with f32 accumulation vs. f32 reference matmuls.
    assert jnp.allclose(out, ref, atol=2e-2, rtol=2e-2), "mismatch vs reference"

    print("KERNEL_OK")
</pallas_src>

<mosaic_0001>
module attributes {stable_mosaic.version = 11 : i64} {
  func.func @_ffn_kernel(%arg0: i32, %arg1: i32, %arg2: memref<16x32xf32, #tpu.memory_space<vmem>>, %arg3: memref<1x32xf32, #tpu.memory_space<vmem>>, %arg4: memref<1x32xf32, #tpu.memory_space<vmem>>, %arg5: memref<32x128xbf16, #tpu.memory_space<vmem>>, %arg6: memref<1x128xf32, #tpu.memory_space<vmem>>, %arg7: memref<128x32xbf16, #tpu.memory_space<vmem>>, %arg8: memref<1x32xf32, #tpu.memory_space<vmem>>, %arg9: memref<16x32xf32, #tpu.memory_space<vmem>>, %arg10: memref<16x32xbf16, #tpu.memory_space<vmem>>, %arg11: memref<16x32xf32, #tpu.memory_space<vmem>>) attributes {dimension_semantics = [#tpu.dimension_semantics<parallel>, #tpu.dimension_semantics<arbitrary>], iteration_bounds = array<i64: 1, 1>, scalar_prefetch = 0 : i64, scratch_operands = 2 : i64, tpu.core_type = #tpu.core_type<tc>, window_params = [{transform_indices = @transform_0, window_bounds = array<i64: 16, 32>}, {pipeline_mode = #tpu.pipeline_mode<synchronous>, transform_indices = @transform_1, window_bounds = array<i64: 1, 32>}, {pipeline_mode = #tpu.pipeline_mode<synchronous>, transform_indices = @transform_2, window_bounds = array<i64: 1, 32>}, {transform_indices = @transform_3, window_bounds = array<i64: 32, 128>}, {transform_indices = @transform_4, window_bounds = array<i64: 1, 128>}, {transform_indices = @transform_5, window_bounds = array<i64: 128, 32>}, {pipeline_mode = #tpu.pipeline_mode<synchronous>, transform_indices = @transform_6, window_bounds = array<i64: 1, 32>}, {transform_indices = @transform_7, window_bounds = array<i64: 16, 32>}]} {
    %c0_i32 = arith.constant 0 : i32
    %0 = arith.cmpi eq, %arg1, %c0_i32 : i32
    %1 = arith.extui %0 : i1 to i32
    %c0_i32_0 = arith.constant 0 : i32
    %2 = arith.cmpi ne, %1, %c0_i32_0 : i32
    scf.if %2 {
      %c0_16 = arith.constant 0 : index
      %c0_17 = arith.constant 0 : index
      %24 = vector.load %arg2[%c0_16, %c0_17] : memref<16x32xf32, #tpu.memory_space<vmem>>, vector<16x32xf32>
      %cst_18 = arith.constant dense<0.000000e+00> : vector<16xf32>
      %25 = vector.multi_reduction <add>, %24, %cst_18 [1] : vector<16x32xf32> to vector<16xf32>
      %26 = vector.shape_cast %25 : vector<16xf32> to vector<16x1xf32>
      %cst_19 = arith.constant 3.200000e+01 : f32
      %27 = vector.broadcast %cst_19 : f32 to vector<16x1xf32>
      %28 = arith.divf %26, %27 : vector<16x1xf32>
      %29 = vector.broadcast %28 : vector<16x1xf32> to vector<16x32xf32>
      %30 = arith.subf %24, %29 : vector<16x32xf32>
      %31 = arith.mulf %30, %30 : vector<16x32xf32>
      %cst_20 = arith.constant dense<0.000000e+00> : vector<16xf32>
      %32 = vector.multi_reduction <add>, %31, %cst_20 [1] : vector<16x32xf32> to vector<16xf32>
      %33 = vector.shape_cast %32 : vector<16xf32> to vector<16x1xf32>
      %cst_21 = arith.constant 3.200000e+01 : f32
      %34 = vector.broadcast %cst_21 : f32 to vector<16x1xf32>
      %35 = arith.divf %33, %34 : vector<16x1xf32>
      %cst_22 = arith.constant 9.99999974E-6 : f32
      %36 = vector.broadcast %cst_22 : f32 to vector<16x1xf32>
      %37 = arith.addf %35, %36 : vector<16x1xf32>
      %38 = math.rsqrt %37 : vector<16x1xf32>
      %39 = vector.broadcast %38 : vector<16x1xf32> to vector<16x32xf32>
      %40 = arith.mulf %30, %39 : vector<16x32xf32>
      %c0_23 = arith.constant 0 : index
      %c0_24 = arith.constant 0 : index
      %41 = vector.load %arg3[%c0_23, %c0_24] : memref<1x32xf32, #tpu.memory_space<vmem>>, vector<1x32xf32>
      %42 = vector.broadcast %41 : vector<1x32xf32> to vector<16x32xf32>
      %43 = arith.mulf %40, %42 : vector<16x32xf32>
      %c0_25 = arith.constant 0 : index
      %c0_26 = arith.constant 0 : index
      %44 = vector.load %arg4[%c0_25, %c0_26] : memref<1x32xf32, #tpu.memory_space<vmem>>, vector<1x32xf32>
      %45 = vector.broadcast %44 : vector<1x32xf32> to vector<16x32xf32>
      %46 = arith.addf %43, %45 : vector<16x32xf32>
      %47 = arith.truncf %46 : vector<16x32xf32> to vector<16x32xbf16>
      %c0_27 = arith.constant 0 : index
      %c0_28 = arith.constant 0 : index
      %48 = vector.load %arg10[%c0_27, %c0_28] : memref<16x32xbf16, #tpu.memory_space<vmem>>, vector<16x32xbf16>
      tpu.vector_store %arg10[%c0_27, %c0_28], %47 {strides = array<i32>} : memref<16x32xbf16, #tpu.memory_space<vmem>>, vector<16x32xbf16>,
      %cst_29 = arith.constant 0.000000e+00 : f32
      %49 = vector.broadcast %cst_29 : f32 to vector<16x32xf32>
      %c0_30 = arith.constant 0 : index
      %c0_31 = arith.constant 0 : index
      %50 = vector.load %arg11[%c0_30, %c0_31] : memref<16x32xf32, #tpu.memory_space<vmem>>, vector<16x32xf32>
      tpu.vector_store %arg11[%c0_30, %c0_31], %49 {strides = array<i32>} : memref<16x32xf32, #tpu.memory_space<vmem>>, vector<16x32xf32>,
    } else {
    }
    %c0 = arith.constant 0 : index
    %c0_1 = arith.constant 0 : index
    %3 = vector.load %arg10[%c0, %c0_1] : memref<16x32xbf16, #tpu.memory_space<vmem>>, vector<16x32xbf16>
    %c0_2 = arith.constant 0 : index
    %c0_3 = arith.constant 0 : index
    %4 = vector.load %arg5[%c0_2, %c0_3] : memref<32x128xbf16, #tpu.memory_space<vmem>>, vector<32x128xbf16>
    %cst = arith.constant dense<0.000000e+00> : vector<16x128xf32>
    %5 = tpu.matmul %3, %4, %cst {dimension_numbers = #tpu.dot_dimension_numbers<[1], [0], [0], [1], [0, 0, 1, 1], [], []>} : vector<16x32xbf16>, vector<32x128xbf16>, vector<16x128xf32> -> vector<16x128xf32>
    %c0_4 = arith.constant 0 : index
    %c0_5 = arith.constant 0 : index
    %6 = vector.load %arg6[%c0_4, %c0_5] : memref<1x128xf32, #tpu.memory_space<vmem>>, vector<1x128xf32>
    %7 = vector.broadcast %6 : vector<1x128xf32> to vector<16x128xf32>
    %8 = arith.addf %5, %7 : vector<16x128xf32>
    %9 = arith.negf %8 : vector<16x128xf32>
    %10 = math.exp %9 : vector<16x128xf32>
    %cst_6 = arith.constant 1.000000e+00 : f32
    %11 = vector.broadcast %cst_6 : f32 to vector<16x128xf32>
    %12 = arith.addf %11, %10 : vector<16x128xf32>
    %13 = arith.divf %11, %12 : vector<16x128xf32>
    %14 = arith.mulf %8, %13 : vector<16x128xf32>
    %c0_7 = arith.constant 0 : index
    %c0_8 = arith.constant 0 : index
    %15 = vector.load %arg11[%c0_7, %c0_8] : memref<16x32xf32, #tpu.memory_space<vmem>>, vector<16x32xf32>
    %16 = arith.truncf %14 : vector<16x128xf32> to vector<16x128xbf16>
    %c0_9 = arith.constant 0 : index
    %c0_10 = arith.constant 0 : index
    %17 = vector.load %arg7[%c0_9, %c0_10] : memref<128x32xbf16, #tpu.memory_space<vmem>>, vector<128x32xbf16>
    %cst_11 = arith.constant dense<0.000000e+00> : vector<16x32xf32>
    %18 = tpu.matmul %16, %17, %cst_11 {dimension_numbers = #tpu.dot_dimension_numbers<[1], [0], [0], [1], [0, 0, 1, 1], [], []>} : vector<16x128xbf16>, vector<128x32xbf16>, vector<16x32xf32> -> vector<16x32xf32>
    %19 = arith.addf %15, %18 : vector<16x32xf32>
    %c0_12 = arith.constant 0 : index
    %c0_13 = arith.constant 0 : index
    %20 = vector.load %arg11[%c0_12, %c0_13] : memref<16x32xf32, #tpu.memory_space<vmem>>, vector<16x32xf32>
    tpu.vector_store %arg11[%c0_12, %c0_13], %19 {strides = array<i32>} : memref<16x32xf32, #tpu.memory_space<vmem>>, vector<16x32xf32>,
    %c0_i32_14 = arith.constant 0 : i32
    %21 = arith.cmpi eq, %arg1, %c0_i32_14 : i32
    %22 = arith.extui %21 : i1 to i32
    %c0_i32_15 = arith.constant 0 : i32
    %23 = arith.cmpi ne, %22, %c0_i32_15 : i32
    scf.if %23 {
      %c0_16 = arith.constant 0 : index
      %c0_17 = arith.constant 0 : index
      %24 = vector.load %arg11[%c0_16, %c0_17] : memref<16x32xf32, #tpu.memory_space<vmem>>, vector<16x32xf32>
      %c0_18 = arith.constant 0 : index
      %c0_19 = arith.constant 0 : index
      %25 = vector.load %arg8[%c0_18, %c0_19] : memref<1x32xf32, #tpu.memory_space<vmem>>, vector<1x32xf32>
      %26 = vector.broadcast %25 : vector<1x32xf32> to vector<16x32xf32>
      %27 = arith.addf %24, %26 : vector<16x32xf32>
      %c0_20 = arith.constant 0 : index
      %c0_21 = arith.constant 0 : index
      %28 = vector.load %arg9[%c0_20, %c0_21] : memref<16x32xf32, #tpu.memory_space<vmem>>, vector<16x32xf32>
      tpu.vector_store %arg9[%c0_20, %c0_21], %27 {strides = array<i32>} : memref<16x32xf32, #tpu.memory_space<vmem>>, vector<16x32xf32>,
    } else {
    }
    return
  }
  func.func @transform_0(%arg0: i32, %arg1: i32) -> (i32, i32) {
    %c0_i32 = arith.constant 0 : i32
    %c0_i32_0 = arith.constant 0 : i32
    return %arg0, %c0_i32 : i32, i32
  }
  func.func @transform_1(%arg0: i32, %arg1: i32) -> (i32, i32) {
    %c0_i32 = arith.constant 0 : i32
    %c0_i32_0 = arith.constant 0 : i32
    %c0_i32_1 = arith.constant 0 : i32
    return %c0_i32, %c0_i32_0 : i32, i32
  }
  func.func @transform_2(%arg0: i32, %arg1: i32) -> (i32, i32) {
    %c0_i32 = arith.constant 0 : i32
    %c0_i32_0 = arith.constant 0 : i32
    %c0_i32_1 = arith.constant 0 : i32
    return %c0_i32, %c0_i32_0 : i32, i32
  }
  func.func @transform_3(%arg0: i32, %arg1: i32) -> (i32, i32) {
    %c0_i32 = arith.constant 0 : i32
    %c0_i32_0 = arith.constant 0 : i32
    return %c0_i32, %arg1 : i32, i32
  }
  func.func @transform_4(%arg0: i32, %arg1: i32) -> (i32, i32) {
    %c0_i32 = arith.constant 0 : i32
    %c0_i32_0 = arith.constant 0 : i32
    return %c0_i32, %arg1 : i32, i32
  }
  func.func @transform_5(%arg0: i32, %arg1: i32) -> (i32, i32) {
    %c0_i32 = arith.constant 0 : i32
    %c0_i32_0 = arith.constant 0 : i32
    return %arg1, %c0_i32 : i32, i32
  }
  func.func @transform_6(%arg0: i32, %arg1: i32) -> (i32, i32) {
    %c0_i32 = arith.constant 0 : i32
    %c0_i32_0 = arith.constant 0 : i32
    %c0_i32_1 = arith.constant 0 : i32
    return %c0_i32, %c0_i32_0 : i32, i32
  }
  func.func @transform_7(%arg0: i32, %arg1: i32) -> (i32, i32) {
    %c0_i32 = arith.constant 0 : i32
    %c0_i32_0 = arith.constant 0 : i32
    return %arg0, %c0_i32 : i32, i32
  }
}

</mosaic_0001>

<llo_original>
// kernel: tpu_custom_call.1
$region0: #{tpu_custom_call.1}
  #allocation0 [shape = 'u32[]', space=smem, size = 0x4, offset = 0x4, fixed_abs, tag = 'smem constant byte address 0x4 - core index']
  #allocation1 [shape = 'u32[144,128]{1,0:T(1,128)}', space=vmem, size = 0x12000, scoped, tag = 'internal scratch']
  #allocation2 [shape = 'bf16[16,32]{1,0:T(16,128)(2,1)}', space=vmem, size = 0x1000, scoped, tag = 'scratch operand']
  #allocation3 [shape = 'f32[16,32]{1,0:T(8,128)}', space=vmem, size = 0x2000, scoped, tag = 'scratch operand']
  %s0 = inlined_call_operand.vmem [shape: f32[16,32], index: 0, kind: input, shape index: {}]
  %s1 = inlined_call_operand.vmem [shape: f32[1,32], index: 1, kind: input, shape index: {}]
  %s2 = inlined_call_operand.vmem [shape: f32[1,32], index: 2, kind: input, shape index: {}]
  %s3 = inlined_call_operand.vmem [shape: bf16[32,128], index: 3, kind: input, shape index: {}]
  %s4 = inlined_call_operand.vmem [shape: f32[1,128], index: 4, kind: input, shape index: {}]
  %s5 = inlined_call_operand.vmem [shape: bf16[128,32], index: 5, kind: input, shape index: {}]
  %s6 = inlined_call_operand.vmem [shape: f32[1,32], index: 6, kind: input, shape index: {}]
  %s7 = inlined_call_operand.hbm [shape: f32[16,32], index: 7, kind: output, shape index: {}]
  %s8 = sld [smem:[#allocation0]]
  $region46: #{tpu_custom_call.1} parent=0
    _
  %s10 = ssub.s32 1, %s8
  %s11 = scalar_select 0, %s10, %s8
  $region1: #{tpu_custom_call.1} parent=0
    #allocation4 [shape = 'u8[8192]{0}', space=vmem, size = 0x2000, scoped, tag = 'output window, operand 0, single buffered']
    #allocation5 [shape = 's32[1]{0}', space=sflag, size = 0x4, scoped, tag = 'scoped memory for tpu_custom_call.1']
    %12 = vsyncpa [#allocation5], 0
    // Predicated region
    $region2: #{tpu_custom_call.1} parent=1 // pred_check
      _
    $region3: #{tpu_custom_call.1} parent=1 // pred_check_branch
      %14 = sbr.rel (0) target = $region5
    $region4: #{tpu_custom_call.1} parent=1 // pred_region
      _
    $region5: #{tpu_custom_call.1} parent=1 // pred_fallthru
      _
    // Predicated region
    $region6: #{tpu_custom_call.1} parent=1 // pred_check
      _
    $region7: #{tpu_custom_call.1} parent=1 // pred_check_branch
      %16 = sbr.rel (0) target = $region9
    $region8: #{tpu_custom_call.1} parent=1 // pred_region
      _
    $region9: #{tpu_custom_call.1} parent=1 // pred_fallthru
      _
    // Predicated region
    $region10: #{tpu_custom_call.1} parent=1 // pred_check
      _
    $region11: #{tpu_custom_call.1} parent=1 // pred_check_branch
      %18 = sbr.rel (0) target = $region13
    $region12: #{tpu_custom_call.1} parent=1 // pred_region
      _
    $region13: #{tpu_custom_call.1} parent=1 // pred_fallthru
      _
    // Predicated region
    $region14: #{tpu_custom_call.1} parent=1 // pred_check
      _
    $region15: #{tpu_custom_call.1} parent=1 // pred_check_branch
      %20 = sbr.rel (0) target = $region17
    $region16: #{tpu_custom_call.1} parent=1 // pred_region
      _
    $region17: #{tpu_custom_call.1} parent=1 // pred_fallthru
      _
    // Predicated region
    $region18: #{tpu_custom_call.1} parent=1 // pred_check
      _
    $region19: #{tpu_custom_call.1} parent=1 // pred_check_branch
      %22 = sbr.rel (0) target = $region21
    $region20: #{tpu_custom_call.1} parent=1 // pred_region
      _
    $region21: #{tpu_custom_call.1} parent=1 // pred_fallthru
      _
    // Predicated region
    $region22: #{tpu_custom_call.1} parent=1 // pred_check
      _
    $region23: #{tpu_custom_call.1} parent=1 // pred_check_branch
      %24 = sbr.rel (0) target = $region25
    $region24: #{tpu_custom_call.1} parent=1 // pred_region
      _
    $region25: #{tpu_custom_call.1} parent=1 // pred_fallthru
      _
    // Predicated region
    $region26: #{tpu_custom_call.1} parent=1 // pred_check
      _
    $region27: #{tpu_custom_call.1} parent=1 // pred_check_branch
      %26 = sbr.rel (0) target = $region29
    $region28: #{tpu_custom_call.1} parent=1 // pred_region
      _
    $region29: #{tpu_custom_call.1} parent=1 // pred_fallthru
      _
    %p28 = scmp.eq.s32.totalorder 0, 0
    // Predicated region
    $region30: #{tpu_custom_call.1} parent=1 // pred_check
      %p29 = pneg %p28
    $region31: #{tpu_custom_call.1} parent=1 // pred_check_branch
      %31 = sbr.rel (%p29) target = $region33
    $region32: #{tpu_custom_call.1} parent=1 // pred_region
      %v32 = vld [vmem:[%s0] sm:$0xff]
      %v33 = vld [vmem:[%s0 + $0x8] sm:$0xff]
      %vm34 = vcmask 261120
      %v35 = vsel %vm34, %v32, 0.0
      %36 = vadd.xlane.f32.xlu0 %v35
      %v37 = vpop.xlane.xlu0 %36
      %v38 = vsel %vm34, %v33, 0.0
      %39 = vadd.xlane.f32.xlu0 %v38
      %v40 = vpop.xlane.xlu0 %39
      %v41 = vrcp.pop 32.0
      %v42 = vmul.f32 %v37, %v41
      %v43 = vmul.f32 %v40, %v41
      %v44 = vsub.f32 %v32, %v42
      %v45 = vsub.f32 %v33, %v43
      %v46 = vmul.f32 %v44, %v44
      %v47 = vmul.f32 %v45, %v45
      %v48 = vsel %vm34, %v46, 0.0
      %49 = vadd.xlane.f32.xlu0 %v48
      %v50 = vpop.xlane.xlu0 %49
      %v51 = vsel %vm34, %v47, 0.0
      %52 = vadd.xlane.f32.xlu0 %v51
      %v53 = vpop.xlane.xlu0 %52
      %v54 = vmul.f32 %v50, %v41
      %v55 = vmul.f32 %v53, %v41
      %v56 = vadd.f32 %v54, 1e-05
      %v57 = vadd.f32 %v55, 1e-05
      %v58 = vrsqrt.pop %v56
      %v59 = vrsqrt.pop %v57
      %v60 = vmul.f32 %v44, %v58
      %v61 = vmul.f32 %v45, %v59
      %v62 = vld [vmem:[%s1] sm:$0x1]
      %v64 = vlaneseq
      %v65 = vshrl.u32 %v64, 7
      %v66 = vsub.s32 0, %v65
      %v67 = vrot.slane %v62, %v66
      %v69 = vmul.f32 %v60, %v67
      %v70 = vmul.f32 %v61, %v67
      %v71 = vld [vmem:[%s2] sm:$0x1]
      %v73 = vlaneseq
      %v74 = vshrl.u32 %v73, 7
      %v75 = vsub.s32 0, %v74
      %v76 = vrot.slane %v71, %v75
      %v78 = vadd.f32 %v69, %v76
      %v79 = vadd.f32 %v70, %v76
      %v80 = vpack.c.bf16 %v79, %v78
      %81 = vst.msk [vmem:[#allocation2] sm:$0xff] %vm34, %v80
      %82 = vst.msk [vmem:[#allocation3] sm:$0xff] %vm34, 0.0
      %83 = vst.msk [vmem:[#allocation3 + $0x8] sm:$0xff] %vm34, 0.0
    $region33: #{tpu_custom_call.1} parent=1 // pred_fallthru
      _
    %v84 = vld [vmem:[#allocation2] sm:$0xff]
    %v85 = vld [vmem:[%s3] sm:$0xf]
    %v86 = vld [vmem:[%s3 + $0x4] sm:$0xf]
    %v87 = vld [vmem:[%s3 + $0x8] sm:$0xf]
    %v88 = vld [vmem:[%s3 + $0xc] sm:$0xf]
    %v89 = vld [vmem:[%s4] sm:$0x1]
    %v91 = vlaneseq
    %v92 = vshrl.u32 %v91, 7
    %v93 = vsub.s32 0, %v92
    %v94 = vrot.slane %v89, %v93
    %v100 = vunpack.c.l.b16 %v85
    %v101 = vunpack.c.l.b16 %v86
    %v102 = vunpack.c.l.b16 %v87
    %v103 = vunpack.c.l.b16 %v88
    %v104 = vpack.c.b16 %v101, %v100
    %v105 = vpack.c.b16 %v103, %v102
    %vm108 = vcmask 261120
    %v110 = vsel %vm108, %v84, 0
    %112 = vmatprep.subr.bf16.mxu0 0
    %113 = vmatpush1.bf16.msra.mxu0 %v104
    %114 = vmatprep.subr.bf16.mxu0 0
    %115 = vmatpush1.bf16.msra.mxu0 %v105
    %116 = vmatprep.subr.bf16.mxu0 0
    %117 = vmatpush1.bf16.msra.mxu0 0
    %118 = vmatprep.subr.bf16.mxu0 0
    %119 = vmatpush1.bf16.msra.mxu0 0
    %120 = vmatprep.subr.bf16.mxu0 0
    %121 = vmatpush1.bf16.msra.mxu0 0
    %122 = vmatprep.subr.bf16.mxu0 0
    %123 = vmatpush1.bf16.msra.mxu0 0
    %124 = vmatprep.subr.bf16.mxu0 0
    %125 = vmatpush1.bf16.msra.mxu0 0
    %126 = vmatprep.subr.bf16.mxu0 0
    %127 = vmatpush1.bf16.msra.mxu0 0
    %128 = vmatprep.subr.bf16.mxu0 0
    %129 = vmatpush1.bf16.msra.mxu0 0
    %130 = vmatprep.subr.bf16.mxu0 0
    %131 = vmatpush1.bf16.msra.mxu0 0
    %132 = vmatprep.subr.bf16.mxu0 0
    %133 = vmatpush1.bf16.msra.mxu0 0
    %134 = vmatprep.subr.bf16.mxu0 0
    %135 = vmatpush1.bf16.msra.mxu0 0
    %136 = vmatprep.subr.bf16.mxu0 0
    %137 = vmatpush1.bf16.msra.mxu0 0
    %138 = vmatprep.subr.bf16.mxu0 0
    %139 = vmatpush1.bf16.msra.mxu0 0
    %140 = vmatprep.subr.bf16.mxu0 0
    %141 = vmatpush1.bf16.msra.mxu0 0
    %142 = vmatprep.subr.bf16.mxu0 0
    %143 = vmatpush1.bf16.msra.mxu0 0
    %144 = vmatprep.mubr.bf16.mxu0 0
    %145 = vmatmul.mubr.bf16.gmra.mrb[0].mxu0 %v110
    %v146 = vpop.f32.mrb[0].mxu0
    %v147 = vadd.f32 %v94, %v146
    %v148 = vpop.f32.mrb[0].mxu0
    %v149 = vpop.f32.mrb[0].mxu0
    %v150 = vadd.f32 %v94, %v149
    %v151 = vpop.f32.mrb[0].mxu0
    %152 = vdwg.mxu0
    %v153 = vxor.u32 %v147, 2147483648
    %v154 = vxor.u32 %v150, 2147483648
    %v155 = vmul.f32 %v153, 1.442695
    %v156 = vpow.pop %v155
    %v157 = vmul.f32 %v154, 1.442695
    %v158 = vpow.pop %v157
    %v159 = vadd.f32 %v156, 1.0
    %v160 = vadd.f32 %v158, 1.0
    %v161 = vrcp.pop %v159
    %v162 = vmul.f32 1.0, %v161
    %v163 = vrcp.pop %v160
    %v164 = vmul.f32 1.0, %v163
    %v165 = vmul.f32 %v147, %v162
    %v166 = vmul.f32 %v150, %v164
    %v167 = vld [vmem:[#allocation3] sm:$0xff]
    %v168 = vld [vmem:[#allocation3 + $0x8] sm:$0xff]
    %v169 = vpack.c.bf16 %v166, %v165
    %v170 = vld [vmem:[%s5] sm:$0xf]
    %v171 = vld [vmem:[%s5 + $0x4] sm:$0xf]
    %v172 = vld [vmem:[%s5 + $0x8] sm:$0xf]
    %v173 = vld [vmem:[%s5 + $0xc] sm:$0xf]
    %v174 = vld [vmem:[%s5 + $0x10] sm:$0xf]
    %v175 = vld [vmem:[%s5 + $0x14] sm:$0xf]
    %v176 = vld [vmem:[%s5 + $0x18] sm:$0xf]
    %v177 = vld [vmem:[%s5 + $0x1c] sm:$0xf]
    %v178 = vld [vmem:[%s5 + $0x20] sm:$0xf]
    %v179 = vld [vmem:[%s5 + $0x24] sm:$0xf]
    %v180 = vld [vmem:[%s5 + $0x28] sm:$0xf]
    %v181 = vld [vmem:[%s5 + $0x2c] sm:$0xf]
    %v182 = vld [vmem:[%s5 + $0x30] sm:$0xf]
    %v183 = vld [vmem:[%s5 + $0x34] sm:$0xf]
    %v184 = vld [vmem:[%s5 + $0x38] sm:$0xf]
    %v185 = vld [vmem:[%s5 + $0x3c] sm:$0xf]
    %v202 = vunpack.c.l.b16 %v170
    %v203 = vunpack.c.l.b16 %v171
    %v204 = vunpack.c.l.b16 %v172
    %v205 = vunpack.c.l.b16 %v173
    %v206 = vunpack.c.l.b16 %v174
    %v207 = vunpack.c.l.b16 %v175
    %v208 = vunpack.c.l.b16 %v176
    %v209 = vunpack.c.l.b16 %v177
    %v210 = vunpack.c.l.b16 %v178
    %v211 = vunpack.c.l.b16 %v179
    %v212 = vunpack.c.l.b16 %v180
    %v213 = vunpack.c.l.b16 %v181
    %v214 = vunpack.c.l.b16 %v182
    %v215 = vunpack.c.l.b16 %v183
    %v216 = vunpack.c.l.b16 %v184
    %v217 = vunpack.c.l.b16 %v185
    %v218 = vpack.c.b16 %v203, %v202
    %v219 = vpack.c.b16 %v205, %v204
    %v220 = vpack.c.b16 %v207, %v206
    %v221 = vpack.c.b16 %v209, %v208
    %v222 = vpack.c.b16 %v211, %v210
    %v223 = vpack.c.b16 %v213, %v212
    %v224 = vpack.c.b16 %v215, %v214
    %v225 = vpack.c.b16 %v217, %v216
    %234 = vmatprep.subr.bf16.mxu0 0
    %235 = vmatpush1.bf16.msra.mxu0 %v218
    %236 = vmatprep.subr.bf16.mxu0 0
    %237 = vmatpush1.bf16.msra.mxu0 %v219
    %238 = vmatprep.subr.bf16.mxu0 0
    %239 = vmatpush1.bf16.msra.mxu0 %v220
    %240 = vmatprep.subr.bf16.mxu0 0
    %241 = vmatpush1.bf16.msra.mxu0 %v221
    %242 = vmatprep.subr.bf16.mxu0 0
    %243 = vmatpush1.bf16.msra.mxu0 %v222
    %244 = vmatprep.subr.bf16.mxu0 0
    %245 = vmatpush1.bf16.msra.mxu0 %v223
    %246 = vmatprep.subr.bf16.mxu0 0
    %247 = vmatpush1.bf16.msra.mxu0 %v224
    %248 = vmatprep.subr.bf16.mxu0 0
    %249 = vmatpush1.bf16.msra.mxu0 %v225
    %250 = vmatprep.subr.bf16.mxu0 0
    %251 = vmatpush1.bf16.msra.mxu0 0
    %252 = vmatprep.subr.bf16.mxu0 0
    %253 = vmatpush1.bf16.msra.mxu0 0
    %254 = vmatprep.subr.bf16.mxu0 0
    %255 = vmatpush1.bf16.msra.mxu0 0
    %256 = vmatprep.subr.bf16.mxu0 0
    %257 = vmatpush1.bf16.msra.mxu0 0
    %258 = vmatprep.subr.bf16.mxu0 0
    %259 = vmatpush1.bf16.msra.mxu0 0
    %260 = vmatprep.subr.bf16.mxu0 0
    %261 = vmatpush1.bf16.msra.mxu0 0
    %262 = vmatprep.subr.bf16.mxu0 0
    %263 = vmatpush1.bf16.msra.mxu0 0
    %264 = vmatprep.subr.bf16.mxu0 0
    %265 = vmatpush1.bf16.msra.mxu0 0
    %266 = vmatprep.mubr.bf16.mxu0 0
    %267 = vmatmul.mubr.bf16.gmra.mrb[0].mxu0 %v169
    %v268 = vpop.f32.mrb[0].mxu0
    %v269 = vadd.f32 0.0, %v268
    %v270 = vpop.f32.mrb[0].mxu0
    %v271 = vpop.f32.mrb[0].mxu0
    %v272 = vadd.f32 0.0, %v271
    %v273 = vpop.f32.mrb[0].mxu0
    %274 = vdwg.mxu0
    %v275 = vadd.f32 %v167, %v269
    %v276 = vadd.f32 %v168, %v272
    %277 = vst.msk [vmem:[#allocation3] sm:$0xff] %vm108, %v275
    %278 = vst.msk [vmem:[#allocation3 + $0x8] sm:$0xff] %vm108, %v276
    // Predicated region
    $region34: #{tpu_custom_call.1} parent=1 // pred_check
      %p279 = pneg %p28
    $region35: #{tpu_custom_call.1} parent=1 // pred_check_branch
      %281 = sbr.rel (%p279) target = $region37
    $region36: #{tpu_custom_call.1} parent=1 // pred_region
      %v282 = vld [vmem:[#allocation3] sm:$0xff]
      %v283 = vld [vmem:[#allocation3 + $0x8] sm:$0xff]
      %v284 = vld [vmem:[%s6] sm:$0x1]
      %v286 = vlaneseq
      %v287 = vshrl.u32 %v286, 7
      %v288 = vsub.s32 0, %v287
      %v289 = vrot.slane %v284, %v288
      %v291 = vadd.f32 %v282, %v289
      %v292 = vadd.f32 %v283, %v289
      %293 = vst.msk [vmem:[#allocation4] sm:$0xff] %vm108, %v291
      %294 = vst.msk [vmem:[#allocation4 + $0x8] sm:$0xff] %vm108, %v292
    $region37: #{tpu_custom_call.1} parent=1 // pred_fallthru
      _
    // Predicated region
    $region38: #{tpu_custom_call.1} parent=1 // pred_check
      _
    $region39: #{tpu_custom_call.1} parent=1 // pred_check_branch
      %296 = sbr.rel (0) target = $region41
    $region40: #{tpu_custom_call.1} parent=1 // pred_region
      %s298 = ssub.s32 256, 256
      %299 = vsyncadd [#allocation5], %s298
      %s300 = sshll.u32 [#allocation4], 4
      %s301 = int_to_ptr.vmem [resolvable:$true] %s300
      %306 = dma.vmem_to_hbm [thread:$0]  %s301, 256, %s7, [#allocation5], 128, 128, 8
    $region41: #{tpu_custom_call.1} parent=1 // pred_fallthru
      _
    // Predicated region
    $region42: #{tpu_custom_call.1} parent=1 // pred_check
      _
    $region43: #{tpu_custom_call.1} parent=1 // pred_check_branch
      %308 = sbr.rel (0) target = $region45
    $region44: #{tpu_custom_call.1} parent=1 // pred_region
      %309 = dma.done [#allocation5], 256
    $region45: #{tpu_custom_call.1} parent=1 // pred_fallthru
      _
    %310 = vsyncpa [#allocation5], 1

</llo_original>
